<compile_context>
chip_gen: v7x
topology: tpu7x:2x2x1
jax: 0.10.0
libtpu: 0.0.40
codegen_flags: <defaults>
</compile_context>

<pallas_src>
import jax
import jax.numpy as jnp
from jax.experimental import pallas as pl
from jax.experimental.pallas import tpu as pltpu

# -- problem sizes (from the module spec) -------------------------------------
BATCH_SIZE = 1
HIDDEN_SIZE = 4
INPUT_SIZE = 4
NUM_LAYERS = 1
SEQ_LEN = 8

# Packed-slab row offsets (each a multiple of 8 -> no (8,128) tile crossing).
_X_ROW = 0            # rows 0..7   : x_flat      (SEQ_LEN*BATCH, INPUT)
_WIH_ROW = 8          # rows 8..11  : W_ih^T      (INPUT, HIDDEN)
_WHH_ROW = 16         # rows 16..19 : W_hh^T      (HIDDEN, HIDDEN)
_BIAS_ROW = 24        # row 24      : b_ih + b_hh (1, HIDDEN)
_SLAB_ROWS = 32


def _bcast_matmul(lhs, rhs_t):
    """lhs @ rhs_t via VPU broadcast-FMAs, pairwise (tree) summed.

    lhs:   (R, K)   rhs_t: (K, H)   ->   (R, H)
    Avoids the MXU push/pop round-trip for these tiny shapes and halves the
    add dependency depth on the serial chain.
    """
    k = rhs_t.shape[0]
    terms = [lhs[:, j:j + 1] * rhs_t[j:j + 1, :] for j in range(k)]
    while len(terms) > 1:
        nxt = [terms[i] + terms[i + 1] for i in range(0, len(terms) - 1, 2)]
        if len(terms) % 2:
            nxt.append(terms[-1])
        terms = nxt
    return terms[0]


def rnn_kernel(packed_ref, out_ref, xb_ref):
    """tanh-RNN recurrence, fully unrolled, VPU/EUP only.

    packed_ref : (32, HIDDEN)            VMEM  (x | W_ih^T | W_hh^T | bias slab)
    out_ref    : (SEQ_LEN*BATCH, HIDDEN) VMEM
    xb_ref     : (SEQ_LEN, HIDDEN)       VMEM scratch (input projection spill)
    """
    x = packed_ref[_X_ROW:_X_ROW + SEQ_LEN * BATCH_SIZE, :]          # (8, 4)
    wih_t = packed_ref[_WIH_ROW:_WIH_ROW + INPUT_SIZE, :]            # (4, 4)
    whh_t = packed_ref[_WHH_ROW:_WHH_ROW + HIDDEN_SIZE, :]           # (4, 4)
    bias = packed_ref[_BIAS_ROW:_BIAS_ROW + 1, :]                    # (1, 4)

    # ---- hoisted input projection for all timesteps (no MXU) ---------------
    xb_ref[...] = _bcast_matmul(x, wih_t) + bias

    # ---- serial recurrence, fully unrolled ----------------------------------
    # t = 0: h_{-1} = 0, so h_0 = tanh(xb[0]).
    h = jnp.tanh(xb_ref[0:1, :])
    out_ref[0:1, :] = h

    for t in range(1, SEQ_LEN):
        rec = _bcast_matmul(h, whh_t)                 # (1, HIDDEN) VPU FMAs
        h = jnp.tanh(xb_ref[t:t + 1, :] + rec)        # EUP tanh
        out_ref[t:t + 1, :] = h                       # per-step store (free slot)


def rnn_forward(x, w_ih, w_hh, b_ih, b_hh):
    """x: (SEQ_LEN, BATCH, INPUT) -> (SEQ_LEN*BATCH, HIDDEN).

    Matches `out.view(-1, hidden_size)` of the PyTorch module (BATCH=1).
    """
    assert x.shape == (SEQ_LEN, BATCH_SIZE, INPUT_SIZE)
    assert BATCH_SIZE == 1, "kernel assumes batch=1 (as in the module spec)"

    x_flat = x.reshape(SEQ_LEN * BATCH_SIZE, INPUT_SIZE).astype(jnp.float32)
    bias = (b_ih + b_hh).reshape(1, HIDDEN_SIZE).astype(jnp.float32)
    pad4 = jnp.zeros((4, HIDDEN_SIZE), jnp.float32)
    pad7 = jnp.zeros((7, HIDDEN_SIZE), jnp.float32)

    # One fused XLA op builds the slab (transposes folded in); one input DMA.
    slab = jnp.concatenate(
        [
            x_flat,                          # rows 0..7
            w_ih.T.astype(jnp.float32),      # rows 8..11
            pad4,                            # rows 12..15
            w_hh.T.astype(jnp.float32),      # rows 16..19
            pad4,                            # rows 20..23
            bias,                            # row 24
            pad7,                            # rows 25..31
        ],
        axis=0,
    )
    assert slab.shape == (_SLAB_ROWS, HIDDEN_SIZE)

    vmem = pl.BlockSpec(memory_space=pltpu.MemorySpace.VMEM)
    out = pl.pallas_call(
        rnn_kernel,
        out_shape=jax.ShapeDtypeStruct(
            (SEQ_LEN * BATCH_SIZE, HIDDEN_SIZE), jnp.float32),
        in_specs=[vmem],
        out_specs=vmem,
        scratch_shapes=[pltpu.VMEM((SEQ_LEN, HIDDEN_SIZE), jnp.float32)],
    )(slab)

    return out  # already (SEQ_LEN*BATCH, HIDDEN); view(-1, H) is a no-op


def _reference(x, w_ih, w_hh, b_ih, b_hh):
    """Pure-JAX reference (PyTorch nn.RNN forward, tanh, h0=0)."""
    h = jnp.zeros((BATCH_SIZE, HIDDEN_SIZE), jnp.float32)
    outs = []
    for t in range(SEQ_LEN):
        h = jnp.tanh(x[t] @ w_ih.T + b_ih + h @ w_hh.T + b_hh)
        outs.append(h)
    return jnp.stack(outs, axis=0).reshape(-1, HIDDEN_SIZE)


if __name__ == "__main__":
    key = jax.random.PRNGKey(0)
    k_x, k_wih, k_whh, k_bih, k_bhh = jax.random.split(key, 5)

    # Deterministic params, matching PyTorch RNN's U(-1/sqrt(H), 1/sqrt(H)).
    bound = 1.0 / (HIDDEN_SIZE ** 0.5)
    w_ih = jax.random.uniform(k_wih, (HIDDEN_SIZE, INPUT_SIZE),
                              minval=-bound, maxval=bound, dtype=jnp.float32)
    w_hh = jax.random.uniform(k_whh, (HIDDEN_SIZE, HIDDEN_SIZE),
                              minval=-bound, maxval=bound, dtype=jnp.float32)
    b_ih = jax.random.uniform(k_bih, (HIDDEN_SIZE,),
                              minval=-bound, maxval=bound, dtype=jnp.float32)
    b_hh = jax.random.uniform(k_bhh, (HIDDEN_SIZE,),
                              minval=-bound, maxval=bound, dtype=jnp.float32)

    x = jax.random.normal(k_x, (SEQ_LEN, BATCH_SIZE, INPUT_SIZE),
                          dtype=jnp.float32)

    out = rnn_forward(x, w_ih, w_hh, b_ih, b_hh)
    out = jax.block_until_ready(out)

    ref = _reference(x, w_ih, w_hh, b_ih, b_hh)
    assert out.shape == (SEQ_LEN * BATCH_SIZE, HIDDEN_SIZE), out.shape
    assert jnp.allclose(out, ref, atol=1e-5, rtol=1e-5), "mismatch vs reference"

    print("KERNEL_OK")
</pallas_src>

<mosaic_0001>
module attributes {stable_mosaic.version = 11 : i64} {
  func.func @rnn_kernel(%arg0: memref<32x4xf32, #tpu.memory_space<vmem>>, %arg1: memref<8x4xf32, #tpu.memory_space<vmem>>, %arg2: memref<8x4xf32, #tpu.memory_space<vmem>>) attributes {dimension_semantics = [], scalar_prefetch = 0 : i64, scratch_operands = 1 : i64, tpu.core_type = #tpu.core_type<tc>} {
    %c0 = arith.constant 0 : index
    %c0_0 = arith.constant 0 : index
    %0 = vector.load %arg0[%c0, %c0_0] : memref<32x4xf32, #tpu.memory_space<vmem>>, vector<8x4xf32>
    %c8 = arith.constant 8 : index
    %c0_1 = arith.constant 0 : index
    %1 = vector.load %arg0[%c8, %c0_1] : memref<32x4xf32, #tpu.memory_space<vmem>>, vector<4x4xf32>
    %c16 = arith.constant 16 : index
    %c0_2 = arith.constant 0 : index
    %2 = vector.load %arg0[%c16, %c0_2] : memref<32x4xf32, #tpu.memory_space<vmem>>, vector<4x4xf32>
    %c24 = arith.constant 24 : index
    %c0_3 = arith.constant 0 : index
    %3 = vector.load %arg0[%c24, %c0_3] : memref<32x4xf32, #tpu.memory_space<vmem>>, vector<1x4xf32>
    %4 = vector.extract_strided_slice %0 {offsets = [0, 0], sizes = [8, 1], strides = [1, 1]} : vector<8x4xf32> to vector<8x1xf32>
    %5 = vector.extract_strided_slice %1 {offsets = [0, 0], sizes = [1, 4], strides = [1, 1]} : vector<4x4xf32> to vector<1x4xf32>
    %6 = vector.broadcast %4 : vector<8x1xf32> to vector<8x4xf32>
    %7 = vector.broadcast %5 : vector<1x4xf32> to vector<8x4xf32>
    %8 = arith.mulf %6, %7 : vector<8x4xf32>
    %9 = vector.extract_strided_slice %0 {offsets = [0, 1], sizes = [8, 1], strides = [1, 1]} : vector<8x4xf32> to vector<8x1xf32>
    %10 = vector.extract_strided_slice %1 {offsets = [1, 0], sizes = [1, 4], strides = [1, 1]} : vector<4x4xf32> to vector<1x4xf32>
    %11 = vector.broadcast %9 : vector<8x1xf32> to vector<8x4xf32>
    %12 = vector.broadcast %10 : vector<1x4xf32> to vector<8x4xf32>
    %13 = arith.mulf %11, %12 : vector<8x4xf32>
    %14 = vector.extract_strided_slice %0 {offsets = [0, 2], sizes = [8, 1], strides = [1, 1]} : vector<8x4xf32> to vector<8x1xf32>
    %15 = vector.extract_strided_slice %1 {offsets = [2, 0], sizes = [1, 4], strides = [1, 1]} : vector<4x4xf32> to vector<1x4xf32>
    %16 = vector.broadcast %14 : vector<8x1xf32> to vector<8x4xf32>
    %17 = vector.broadcast %15 : vector<1x4xf32> to vector<8x4xf32>
    %18 = arith.mulf %16, %17 : vector<8x4xf32>
    %19 = vector.extract_strided_slice %0 {offsets = [0, 3], sizes = [8, 1], strides = [1, 1]} : vector<8x4xf32> to vector<8x1xf32>
    %20 = vector.extract_strided_slice %1 {offsets = [3, 0], sizes = [1, 4], strides = [1, 1]} : vector<4x4xf32> to vector<1x4xf32>
    %21 = vector.broadcast %19 : vector<8x1xf32> to vector<8x4xf32>
    %22 = vector.broadcast %20 : vector<1x4xf32> to vector<8x4xf32>
    %23 = arith.mulf %21, %22 : vector<8x4xf32>
    %24 = arith.addf %8, %13 : vector<8x4xf32>
    %25 = arith.addf %18, %23 : vector<8x4xf32>
    %26 = arith.addf %24, %25 : vector<8x4xf32>
    %27 = vector.broadcast %3 : vector<1x4xf32> to vector<8x4xf32>
    %28 = arith.addf %26, %27 : vector<8x4xf32>
    %c0_4 = arith.constant 0 : index
    %c0_5 = arith.constant 0 : index
    %29 = vector.load %arg2[%c0_4, %c0_5] : memref<8x4xf32, #tpu.memory_space<vmem>>, vector<8x4xf32>
    tpu.vector_store %arg2[%c0_4, %c0_5], %28 {strides = array<i32>} : memref<8x4xf32, #tpu.memory_space<vmem>>, vector<8x4xf32>,
    %c0_6 = arith.constant 0 : index
    %c0_7 = arith.constant 0 : index
    %30 = vector.load %arg2[%c0_6, %c0_7] : memref<8x4xf32, #tpu.memory_space<vmem>>, vector<1x4xf32>
    %31 = math.tanh %30 : vector<1x4xf32>
    %c0_8 = arith.constant 0 : index
    %c0_9 = arith.constant 0 : index
    %32 = vector.load %arg1[%c0_8, %c0_9] : memref<8x4xf32, #tpu.memory_space<vmem>>, vector<1x4xf32>
    tpu.vector_store %arg1[%c0_8, %c0_9], %31 {strides = array<i32>} : memref<8x4xf32, #tpu.memory_space<vmem>>, vector<1x4xf32>,
    %33 = vector.extract_strided_slice %31 {offsets = [0, 0], sizes = [1, 1], strides = [1, 1]} : vector<1x4xf32> to vector<1x1xf32>
    %34 = vector.extract_strided_slice %2 {offsets = [0, 0], sizes = [1, 4], strides = [1, 1]} : vector<4x4xf32> to vector<1x4xf32>
    %35 = vector.broadcast %33 : vector<1x1xf32> to vector<1x4xf32>
    %36 = arith.mulf %35, %34 : vector<1x4xf32>
    %37 = vector.extract_strided_slice %31 {offsets = [0, 1], sizes = [1, 1], strides = [1, 1]} : vector<1x4xf32> to vector<1x1xf32>
    %38 = vector.extract_strided_slice %2 {offsets = [1, 0], sizes = [1, 4], strides = [1, 1]} : vector<4x4xf32> to vector<1x4xf32>
    %39 = vector.broadcast %37 : vector<1x1xf32> to vector<1x4xf32>
    %40 = arith.mulf %39, %38 : vector<1x4xf32>
    %41 = vector.extract_strided_slice %31 {offsets = [0, 2], sizes = [1, 1], strides = [1, 1]} : vector<1x4xf32> to vector<1x1xf32>
    %42 = vector.extract_strided_slice %2 {offsets = [2, 0], sizes = [1, 4], strides = [1, 1]} : vector<4x4xf32> to vector<1x4xf32>
    %43 = vector.broadcast %41 : vector<1x1xf32> to vector<1x4xf32>
    %44 = arith.mulf %43, %42 : vector<1x4xf32>
    %45 = vector.extract_strided_slice %31 {offsets = [0, 3], sizes = [1, 1], strides = [1, 1]} : vector<1x4xf32> to vector<1x1xf32>
    %46 = vector.extract_strided_slice %2 {offsets = [3, 0], sizes = [1, 4], strides = [1, 1]} : vector<4x4xf32> to vector<1x4xf32>
    %47 = vector.broadcast %45 : vector<1x1xf32> to vector<1x4xf32>
    %48 = arith.mulf %47, %46 : vector<1x4xf32>
    %49 = arith.addf %36, %40 : vector<1x4xf32>
    %50 = arith.addf %44, %48 : vector<1x4xf32>
    %51 = arith.addf %49, %50 : vector<1x4xf32>
    %c1 = arith.constant 1 : index
    %c0_10 = arith.constant 0 : index
    %52 = vector.load %arg2[%c1, %c0_10] : memref<8x4xf32, #tpu.memory_space<vmem>>, vector<1x4xf32>
    %53 = arith.addf %52, %51 : vector<1x4xf32>
    %54 = math.tanh %53 : vector<1x4xf32>
    %c1_11 = arith.constant 1 : index
    %c0_12 = arith.constant 0 : index
    %55 = vector.load %arg1[%c1_11, %c0_12] : memref<8x4xf32, #tpu.memory_space<vmem>>, vector<1x4xf32>
    tpu.vector_store %arg1[%c1_11, %c0_12], %54 {strides = array<i32>} : memref<8x4xf32, #tpu.memory_space<vmem>>, vector<1x4xf32>,
    %56 = vector.extract_strided_slice %54 {offsets = [0, 0], sizes = [1, 1], strides = [1, 1]} : vector<1x4xf32> to vector<1x1xf32>
    %57 = vector.extract_strided_slice %2 {offsets = [0, 0], sizes = [1, 4], strides = [1, 1]} : vector<4x4xf32> to vector<1x4xf32>
    %58 = vector.broadcast %56 : vector<1x1xf32> to vector<1x4xf32>
    %59 = arith.mulf %58, %57 : vector<1x4xf32>
    %60 = vector.extract_strided_slice %54 {offsets = [0, 1], sizes = [1, 1], strides = [1, 1]} : vector<1x4xf32> to vector<1x1xf32>
    %61 = vector.extract_strided_slice %2 {offsets = [1, 0], sizes = [1, 4], strides = [1, 1]} : vector<4x4xf32> to vector<1x4xf32>
    %62 = vector.broadcast %60 : vector<1x1xf32> to vector<1x4xf32>
    %63 = arith.mulf %62, %61 : vector<1x4xf32>
    %64 = vector.extract_strided_slice %54 {offsets = [0, 2], sizes = [1, 1], strides = [1, 1]} : vector<1x4xf32> to vector<1x1xf32>
    %65 = vector.extract_strided_slice %2 {offsets = [2, 0], sizes = [1, 4], strides = [1, 1]} : vector<4x4xf32> to vector<1x4xf32>
    %66 = vector.broadcast %64 : vector<1x1xf32> to vector<1x4xf32>
    %67 = arith.mulf %66, %65 : vector<1x4xf32>
    %68 = vector.extract_strided_slice %54 {offsets = [0, 3], sizes = [1, 1], strides = [1, 1]} : vector<1x4xf32> to vector<1x1xf32>
    %69 = vector.extract_strided_slice %2 {offsets = [3, 0], sizes = [1, 4], strides = [1, 1]} : vector<4x4xf32> to vector<1x4xf32>
    %70 = vector.broadcast %68 : vector<1x1xf32> to vector<1x4xf32>
    %71 = arith.mulf %70, %69 : vector<1x4xf32>
    %72 = arith.addf %59, %63 : vector<1x4xf32>
    %73 = arith.addf %67, %71 : vector<1x4xf32>
    %74 = arith.addf %72, %73 : vector<1x4xf32>
    %c2 = arith.constant 2 : index
    %c0_13 = arith.constant 0 : index
    %75 = vector.load %arg2[%c2, %c0_13] : memref<8x4xf32, #tpu.memory_space<vmem>>, vector<1x4xf32>
    %76 = arith.addf %75, %74 : vector<1x4xf32>
    %77 = math.tanh %76 : vector<1x4xf32>
    %c2_14 = arith.constant 2 : index
    %c0_15 = arith.constant 0 : index
    %78 = vector.load %arg1[%c2_14, %c0_15] : memref<8x4xf32, #tpu.memory_space<vmem>>, vector<1x4xf32>
    tpu.vector_store %arg1[%c2_14, %c0_15], %77 {strides = array<i32>} : memref<8x4xf32, #tpu.memory_space<vmem>>, vector<1x4xf32>,
    %79 = vector.extract_strided_slice %77 {offsets = [0, 0], sizes = [1, 1], strides = [1, 1]} : vector<1x4xf32> to vector<1x1xf32>
    %80 = vector.extract_strided_slice %2 {offsets = [0, 0], sizes = [1, 4], strides = [1, 1]} : vector<4x4xf32> to vector<1x4xf32>
    %81 = vector.broadcast %79 : vector<1x1xf32> to vector<1x4xf32>
    %82 = arith.mulf %81, %80 : vector<1x4xf32>
    %83 = vector.extract_strided_slice %77 {offsets = [0, 1], sizes = [1, 1], strides = [1, 1]} : vector<1x4xf32> to vector<1x1xf32>
    %84 = vector.extract_strided_slice %2 {offsets = [1, 0], sizes = [1, 4], strides = [1, 1]} : vector<4x4xf32> to vector<1x4xf32>
    %85 = vector.broadcast %83 : vector<1x1xf32> to vector<1x4xf32>
    %86 = arith.mulf %85, %84 : vector<1x4xf32>
    %87 = vector.extract_strided_slice %77 {offsets = [0, 2], sizes = [1, 1], strides = [1, 1]} : vector<1x4xf32> to vector<1x1xf32>
    %88 = vector.extract_strided_slice %2 {offsets = [2, 0], sizes = [1, 4], strides = [1, 1]} : vector<4x4xf32> to vector<1x4xf32>
    %89 = vector.broadcast %87 : vector<1x1xf32> to vector<1x4xf32>
    %90 = arith.mulf %89, %88 : vector<1x4xf32>
    %91 = vector.extract_strided_slice %77 {offsets = [0, 3], sizes = [1, 1], strides = [1, 1]} : vector<1x4xf32> to vector<1x1xf32>
    %92 = vector.extract_strided_slice %2 {offsets = [3, 0], sizes = [1, 4], strides = [1, 1]} : vector<4x4xf32> to vector<1x4xf32>
    %93 = vector.broadcast %91 : vector<1x1xf32> to vector<1x4xf32>
    %94 = arith.mulf %93, %92 : vector<1x4xf32>
    %95 = arith.addf %82, %86 : vector<1x4xf32>
    %96 = arith.addf %90, %94 : vector<1x4xf32>
    %97 = arith.addf %95, %96 : vector<1x4xf32>
    %c3 = arith.constant 3 : index
    %c0_16 = arith.constant 0 : index
    %98 = vector.load %arg2[%c3, %c0_16] : memref<8x4xf32, #tpu.memory_space<vmem>>, vector<1x4xf32>
    %99 = arith.addf %98, %97 : vector<1x4xf32>
    %100 = math.tanh %99 : vector<1x4xf32>
    %c3_17 = arith.constant 3 : index
    %c0_18 = arith.constant 0 : index
    %101 = vector.load %arg1[%c3_17, %c0_18] : memref<8x4xf32, #tpu.memory_space<vmem>>, vector<1x4xf32>
    tpu.vector_store %arg1[%c3_17, %c0_18], %100 {strides = array<i32>} : memref<8x4xf32, #tpu.memory_space<vmem>>, vector<1x4xf32>,
    %102 = vector.extract_strided_slice %100 {offsets = [0, 0], sizes = [1, 1], strides = [1, 1]} : vector<1x4xf32> to vector<1x1xf32>
    %103 = vector.extract_strided_slice %2 {offsets = [0, 0], sizes = [1, 4], strides = [1, 1]} : vector<4x4xf32> to vector<1x4xf32>
    %104 = vector.broadcast %102 : vector<1x1xf32> to vector<1x4xf32>
    %105 = arith.mulf %104, %103 : vector<1x4xf32>
    %106 = vector.extract_strided_slice %100 {offsets = [0, 1], sizes = [1, 1], strides = [1, 1]} : vector<1x4xf32> to vector<1x1xf32>
    %107 = vector.extract_strided_slice %2 {offsets = [1, 0], sizes = [1, 4], strides = [1, 1]} : vector<4x4xf32> to vector<1x4xf32>
    %108 = vector.broadcast %106 : vector<1x1xf32> to vector<1x4xf32>
    %109 = arith.mulf %108, %107 : vector<1x4xf32>
    %110 = vector.extract_strided_slice %100 {offsets = [0, 2], sizes = [1, 1], strides = [1, 1]} : vector<1x4xf32> to vector<1x1xf32>
    %111 = vector.extract_strided_slice %2 {offsets = [2, 0], sizes = [1, 4], strides = [1, 1]} : vector<4x4xf32> to vector<1x4xf32>
    %112 = vector.broadcast %110 : vector<1x1xf32> to vector<1x4xf32>
    %113 = arith.mulf %112, %111 : vector<1x4xf32>
    %114 = vector.extract_strided_slice %100 {offsets = [0, 3], sizes = [1, 1], strides = [1, 1]} : vector<1x4xf32> to vector<1x1xf32>
    %115 = vector.extract_strided_slice %2 {offsets = [3, 0], sizes = [1, 4], strides = [1, 1]} : vector<4x4xf32> to vector<1x4xf32>
    %116 = vector.broadcast %114 : vector<1x1xf32> to vector<1x4xf32>
    %117 = arith.mulf %116, %115 : vector<1x4xf32>
    %118 = arith.addf %105, %109 : vector<1x4xf32>
    %119 = arith.addf %113, %117 : vector<1x4xf32>
    %120 = arith.addf %118, %119 : vector<1x4xf32>
    %c4 = arith.constant 4 : index
    %c0_19 = arith.constant 0 : index
    %121 = vector.load %arg2[%c4, %c0_19] : memref<8x4xf32, #tpu.memory_space<vmem>>, vector<1x4xf32>
    %122 = arith.addf %121, %120 : vector<1x4xf32>
    %123 = math.tanh %122 : vector<1x4xf32>
    %c4_20 = arith.constant 4 : index
    %c0_21 = arith.constant 0 : index
    %124 = vector.load %arg1[%c4_20, %c0_21] : memref<8x4xf32, #tpu.memory_space<vmem>>, vector<1x4xf32>
    tpu.vector_store %arg1[%c4_20, %c0_21], %123 {strides = array<i32>} : memref<8x4xf32, #tpu.memory_space<vmem>>, vector<1x4xf32>,
    %125 = vector.extract_strided_slice %123 {offsets = [0, 0], sizes = [1, 1], strides = [1, 1]} : vector<1x4xf32> to vector<1x1xf32>
    %126 = vector.extract_strided_slice %2 {offsets = [0, 0], sizes = [1, 4], strides = [1, 1]} : vector<4x4xf32> to vector<1x4xf32>
    %127 = vector.broadcast %125 : vector<1x1xf32> to vector<1x4xf32>
    %128 = arith.mulf %127, %126 : vector<1x4xf32>
    %129 = vector.extract_strided_slice %123 {offsets = [0, 1], sizes = [1, 1], strides = [1, 1]} : vector<1x4xf32> to vector<1x1xf32>
    %130 = vector.extract_strided_slice %2 {offsets = [1, 0], sizes = [1, 4], strides = [1, 1]} : vector<4x4xf32> to vector<1x4xf32>
    %131 = vector.broadcast %129 : vector<1x1xf32> to vector<1x4xf32>
    %132 = arith.mulf %131, %130 : vector<1x4xf32>
    %133 = vector.extract_strided_slice %123 {offsets = [0, 2], sizes = [1, 1], strides = [1, 1]} : vector<1x4xf32> to vector<1x1xf32>
    %134 = vector.extract_strided_slice %2 {offsets = [2, 0], sizes = [1, 4], strides = [1, 1]} : vector<4x4xf32> to vector<1x4xf32>
    %135 = vector.broadcast %133 : vector<1x1xf32> to vector<1x4xf32>
    %136 = arith.mulf %135, %134 : vector<1x4xf32>
    %137 = vector.extract_strided_slice %123 {offsets = [0, 3], sizes = [1, 1], strides = [1, 1]} : vector<1x4xf32> to vector<1x1xf32>
    %138 = vector.extract_strided_slice %2 {offsets = [3, 0], sizes = [1, 4], strides = [1, 1]} : vector<4x4xf32> to vector<1x4xf32>
    %139 = vector.broadcast %137 : vector<1x1xf32> to vector<1x4xf32>
    %140 = arith.mulf %139, %138 : vector<1x4xf32>
    %141 = arith.addf %128, %132 : vector<1x4xf32>
    %142 = arith.addf %136, %140 : vector<1x4xf32>
    %143 = arith.addf %141, %142 : vector<1x4xf32>
    %c5 = arith.constant 5 : index
    %c0_22 = arith.constant 0 : index
    %144 = vector.load %arg2[%c5, %c0_22] : memref<8x4xf32, #tpu.memory_space<vmem>>, vector<1x4xf32>
    %145 = arith.addf %144, %143 : vector<1x4xf32>
    %146 = math.tanh %145 : vector<1x4xf32>
    %c5_23 = arith.constant 5 : index
    %c0_24 = arith.constant 0 : index
    %147 = vector.load %arg1[%c5_23, %c0_24] : memref<8x4xf32, #tpu.memory_space<vmem>>, vector<1x4xf32>
    tpu.vector_store %arg1[%c5_23, %c0_24], %146 {strides = array<i32>} : memref<8x4xf32, #tpu.memory_space<vmem>>, vector<1x4xf32>,
    %148 = vector.extract_strided_slice %146 {offsets = [0, 0], sizes = [1, 1], strides = [1, 1]} : vector<1x4xf32> to vector<1x1xf32>
    %149 = vector.extract_strided_slice %2 {offsets = [0, 0], sizes = [1, 4], strides = [1, 1]} : vector<4x4xf32> to vector<1x4xf32>
    %150 = vector.broadcast %148 : vector<1x1xf32> to vector<1x4xf32>
    %151 = arith.mulf %150, %149 : vector<1x4xf32>
    %152 = vector.extract_strided_slice %146 {offsets = [0, 1], sizes = [1, 1], strides = [1, 1]} : vector<1x4xf32> to vector<1x1xf32>
    %153 = vector.extract_strided_slice %2 {offsets = [1, 0], sizes = [1, 4], strides = [1, 1]} : vector<4x4xf32> to vector<1x4xf32>
    %154 = vector.broadcast %152 : vector<1x1xf32> to vector<1x4xf32>
    %155 = arith.mulf %154, %153 : vector<1x4xf32>
    %156 = vector.extract_strided_slice %146 {offsets = [0, 2], sizes = [1, 1], strides = [1, 1]} : vector<1x4xf32> to vector<1x1xf32>
    %157 = vector.extract_strided_slice %2 {offsets = [2, 0], sizes = [1, 4], strides = [1, 1]} : vector<4x4xf32> to vector<1x4xf32>
    %158 = vector.broadcast %156 : vector<1x1xf32> to vector<1x4xf32>
    %159 = arith.mulf %158, %157 : vector<1x4xf32>
    %160 = vector.extract_strided_slice %146 {offsets = [0, 3], sizes = [1, 1], strides = [1, 1]} : vector<1x4xf32> to vector<1x1xf32>
    %161 = vector.extract_strided_slice %2 {offsets = [3, 0], sizes = [1, 4], strides = [1, 1]} : vector<4x4xf32> to vector<1x4xf32>
    %162 = vector.broadcast %160 : vector<1x1xf32> to vector<1x4xf32>
    %163 = arith.mulf %162, %161 : vector<1x4xf32>
    %164 = arith.addf %151, %155 : vector<1x4xf32>
    %165 = arith.addf %159, %163 : vector<1x4xf32>
    %166 = arith.addf %164, %165 : vector<1x4xf32>
    %c6 = arith.constant 6 : index
    %c0_25 = arith.constant 0 : index
    %167 = vector.load %arg2[%c6, %c0_25] : memref<8x4xf32, #tpu.memory_space<vmem>>, vector<1x4xf32>
    %168 = arith.addf %167, %166 : vector<1x4xf32>
    %169 = math.tanh %168 : vector<1x4xf32>
    %c6_26 = arith.constant 6 : index
    %c0_27 = arith.constant 0 : index
    %170 = vector.load %arg1[%c6_26, %c0_27] : memref<8x4xf32, #tpu.memory_space<vmem>>, vector<1x4xf32>
    tpu.vector_store %arg1[%c6_26, %c0_27], %169 {strides = array<i32>} : memref<8x4xf32, #tpu.memory_space<vmem>>, vector<1x4xf32>,
    %171 = vector.extract_strided_slice %169 {offsets = [0, 0], sizes = [1, 1], strides = [1, 1]} : vector<1x4xf32> to vector<1x1xf32>
    %172 = vector.extract_strided_slice %2 {offsets = [0, 0], sizes = [1, 4], strides = [1, 1]} : vector<4x4xf32> to vector<1x4xf32>
    %173 = vector.broadcast %171 : vector<1x1xf32> to vector<1x4xf32>
    %174 = arith.mulf %173, %172 : vector<1x4xf32>
    %175 = vector.extract_strided_slice %169 {offsets = [0, 1], sizes = [1, 1], strides = [1, 1]} : vector<1x4xf32> to vector<1x1xf32>
    %176 = vector.extract_strided_slice %2 {offsets = [1, 0], sizes = [1, 4], strides = [1, 1]} : vector<4x4xf32> to vector<1x4xf32>
    %177 = vector.broadcast %175 : vector<1x1xf32> to vector<1x4xf32>
    %178 = arith.mulf %177, %176 : vector<1x4xf32>
    %179 = vector.extract_strided_slice %169 {offsets = [0, 2], sizes = [1, 1], strides = [1, 1]} : vector<1x4xf32> to vector<1x1xf32>
    %180 = vector.extract_strided_slice %2 {offsets = [2, 0], sizes = [1, 4], strides = [1, 1]} : vector<4x4xf32> to vector<1x4xf32>
    %181 = vector.broadcast %179 : vector<1x1xf32> to vector<1x4xf32>
    %182 = arith.mulf %181, %180 : vector<1x4xf32>
    %183 = vector.extract_strided_slice %169 {offsets = [0, 3], sizes = [1, 1], strides = [1, 1]} : vector<1x4xf32> to vector<1x1xf32>
    %184 = vector.extract_strided_slice %2 {offsets = [3, 0], sizes = [1, 4], strides = [1, 1]} : vector<4x4xf32> to vector<1x4xf32>
    %185 = vector.broadcast %183 : vector<1x1xf32> to vector<1x4xf32>
    %186 = arith.mulf %185, %184 : vector<1x4xf32>
    %187 = arith.addf %174, %178 : vector<1x4xf32>
    %188 = arith.addf %182, %186 : vector<1x4xf32>
    %189 = arith.addf %187, %188 : vector<1x4xf32>
    %c7 = arith.constant 7 : index
    %c0_28 = arith.constant 0 : index
    %190 = vector.load %arg2[%c7, %c0_28] : memref<8x4xf32, #tpu.memory_space<vmem>>, vector<1x4xf32>
    %191 = arith.addf %190, %189 : vector<1x4xf32>
    %192 = math.tanh %191 : vector<1x4xf32>
    %c7_29 = arith.constant 7 : index
    %c0_30 = arith.constant 0 : index
    %193 = vector.load %arg1[%c7_29, %c0_30] : memref<8x4xf32, #tpu.memory_space<vmem>>, vector<1x4xf32>
    tpu.vector_store %arg1[%c7_29, %c0_30], %192 {strides = array<i32>} : memref<8x4xf32, #tpu.memory_space<vmem>>, vector<1x4xf32>,
    return
  }
}

</mosaic_0001>

<llo_original>
// kernel: tpu_custom_call.1
$region0: #{tpu_custom_call.1}
  #allocation0 [shape = 'u32[]', space=smem, size = 0x4, offset = 0x4, fixed_abs, tag = 'smem constant byte address 0x4 - core index']
  #allocation1 [shape = 'u32[144,128]{1,0:T(1,128)}', space=vmem, size = 0x12000, scoped, tag = 'internal scratch']
  #allocation2 [shape = 'f32[8,4]{1,0:T(8,128)}', space=vmem, size = 0x1000, scoped, tag = 'scratch operand']
  %s0 = inlined_call_operand.vmem [shape: f32[32,4], index: 0, kind: input, shape index: {}]
  %s1 = inlined_call_operand.vmem [shape: f32[8,4], index: 1, kind: output, shape index: {}]
  %s2 = sld [smem:[#allocation0]]
  $region14: #{tpu_custom_call.1} parent=0
    _
  %s4 = ssub.s32 1, %s2
  %s5 = scalar_select 0, %s4, %s2
  // Predicated region
  $region2: #{tpu_custom_call.1} parent=0 // pred_check
    _
  $region3: #{tpu_custom_call.1} parent=0 // pred_check_branch
    %7 = sbr.rel (0) target = $region5
  $region4: #{tpu_custom_call.1} parent=0 // pred_region
    _
  $region5: #{tpu_custom_call.1} parent=0 // pred_fallthru
    _
  %v8 = vld [vmem:[%s0] sm:$0xff]
  %v9 = vld [vmem:[%s0 + $0x8] sm:$0xf]
  %v10 = vld [vmem:[%s0 + $0x10] sm:$0xf]
  %v11 = vld [vmem:[%s0 + $0x18] sm:$0x1]
  %13 = vset.pattern.permute.xlu0 0
  %14 = vperm.xlu0 %13, %v8
  %v15 = vpop.permute.xlu0 %14
  %v17 = vlaneseq
  %v18 = vshrl.u32 %v17, 7
  %v19 = vsub.s32 0, %v18
  %v20 = vrot.slane %v9, %v19
  %v21 = vmul.f32 %v15, %v20
  %22 = vset.pattern.permute.xlu0 1
  %23 = vperm.xlu0 %22, %v8
  %v24 = vpop.permute.xlu0 %23
  %v26 = vlaneseq
  %v27 = vshrl.u32 %v26, 7
  %v28 = vsub.s32 1, %v27
  %v29 = vrot.slane %v9, %v28
  %v30 = vmul.f32 %v24, %v29
  %31 = vset.pattern.permute.xlu0 2
  %32 = vperm.xlu0 %31, %v8
  %v33 = vpop.permute.xlu0 %32
  %v35 = vlaneseq
  %v36 = vshrl.u32 %v35, 7
  %v37 = vsub.s32 2, %v36
  %v38 = vrot.slane %v9, %v37
  %v39 = vmul.f32 %v33, %v38
  %40 = vset.pattern.permute.xlu0 3
  %41 = vperm.xlu0 %40, %v8
  %v42 = vpop.permute.xlu0 %41
  %v44 = vlaneseq
  %v45 = vshrl.u32 %v44, 7
  %v46 = vsub.s32 3, %v45
  %v47 = vrot.slane %v9, %v46
  %v48 = vmul.f32 %v42, %v47
  %v49 = vadd.f32 %v21, %v30
  %v50 = vadd.f32 %v39, %v48
  %v51 = vadd.f32 %v49, %v50
  %v52 = vlaneseq
  %v53 = vshrl.u32 %v52, 7
  %v54 = vsub.s32 0, %v53
  %v55 = vrot.slane %v11, %v54
  %v56 = vadd.f32 %v51, %v55
  %vm57 = vcmask 31744
  %58 = vst.msk [vmem:[#allocation2] sm:$0xff] %vm57, %v56
  %v59 = vld [vmem:[#allocation2] sm:$0x1]
  %v60 = vtanh.pop %v59
  %vm61 = vcmask 24576
  %62 = vst.msk [vmem:[%s1] sm:$0x1] %vm61, %v60
  %64 = vset.pattern.permute.xlu0 0
  %65 = vperm.xlu0 %64, %v60
  %v66 = vpop.permute.xlu0 %65
  %v68 = vmul.f32 %v66, %v10
  %69 = vset.pattern.permute.xlu0 1
  %70 = vperm.xlu0 %69, %v60
  %v71 = vpop.permute.xlu0 %70
  %v74 = vrot.slane %v10, 1
  %v76 = vmul.f32 %v71, %v74
  %77 = vset.pattern.permute.xlu0 2
  %78 = vperm.xlu0 %77, %v60
  %v79 = vpop.permute.xlu0 %78
  %v81 = vrot.slane %v10, 2
  %v83 = vmul.f32 %v79, %v81
  %84 = vset.pattern.permute.xlu0 3
  %85 = vperm.xlu0 %84, %v60
  %v86 = vpop.permute.xlu0 %85
  %v88 = vrot.slane %v10, 3
  %v90 = vmul.f32 %v86, %v88
  %v91 = vadd.f32 %v68, %v76
  %v92 = vadd.f32 %v83, %v90
  %v93 = vadd.f32 %v91, %v92
  %v94 = vld [vmem:[#allocation2 + $0x1] sm:$0x1]
  %v95 = vadd.f32 %v94, %v93
  %v96 = vtanh.pop %v95
  %97 = vst.msk [vmem:[%s1 + $0x1] sm:$0x1] %vm61, %v96
  %99 = vset.pattern.permute.xlu0 0
  %100 = vperm.xlu0 %99, %v96
  %v101 = vpop.permute.xlu0 %100
  %v103 = vmul.f32 %v101, %v10
  %104 = vset.pattern.permute.xlu0 1
  %105 = vperm.xlu0 %104, %v96
  %v106 = vpop.permute.xlu0 %105
  %v108 = vmul.f32 %v106, %v74
  %109 = vset.pattern.permute.xlu0 2
  %110 = vperm.xlu0 %109, %v96
  %v111 = vpop.permute.xlu0 %110
  %v113 = vmul.f32 %v111, %v81
  %114 = vset.pattern.permute.xlu0 3
  %115 = vperm.xlu0 %114, %v96
  %v116 = vpop.permute.xlu0 %115
  %v118 = vmul.f32 %v116, %v88
  %v119 = vadd.f32 %v103, %v108
  %v120 = vadd.f32 %v113, %v118
  %v121 = vadd.f32 %v119, %v120
  %v122 = vld [vmem:[#allocation2 + $0x2] sm:$0x1]
  %v123 = vadd.f32 %v122, %v121
  %v124 = vtanh.pop %v123
  %125 = vst.msk [vmem:[%s1 + $0x2] sm:$0x1] %vm61, %v124
  %127 = vset.pattern.permute.xlu0 0
  %128 = vperm.xlu0 %127, %v124
  %v129 = vpop.permute.xlu0 %128
  %v131 = vmul.f32 %v129, %v10
  %132 = vset.pattern.permute.xlu0 1
  %133 = vperm.xlu0 %132, %v124
  %v134 = vpop.permute.xlu0 %133
  %v136 = vmul.f32 %v134, %v74
  %137 = vset.pattern.permute.xlu0 2
  %138 = vperm.xlu0 %137, %v124
  %v139 = vpop.permute.xlu0 %138
  %v141 = vmul.f32 %v139, %v81
  %142 = vset.pattern.permute.xlu0 3
  %143 = vperm.xlu0 %142, %v124
  %v144 = vpop.permute.xlu0 %143
  %v146 = vmul.f32 %v144, %v88
  %v147 = vadd.f32 %v131, %v136
  %v148 = vadd.f32 %v141, %v146
  %v149 = vadd.f32 %v147, %v148
  %v150 = vld [vmem:[#allocation2 + $0x3] sm:$0x1]
  %v151 = vadd.f32 %v150, %v149
  %v152 = vtanh.pop %v151
  %153 = vst.msk [vmem:[%s1 + $0x3] sm:$0x1] %vm61, %v152
  %155 = vset.pattern.permute.xlu0 0
  %156 = vperm.xlu0 %155, %v152
  %v157 = vpop.permute.xlu0 %156
  %v159 = vmul.f32 %v157, %v10
  %160 = vset.pattern.permute.xlu0 1
  %161 = vperm.xlu0 %160, %v152
  %v162 = vpop.permute.xlu0 %161
  %v164 = vmul.f32 %v162, %v74
  %165 = vset.pattern.permute.xlu0 2
  %166 = vperm.xlu0 %165, %v152
  %v167 = vpop.permute.xlu0 %166
  %v169 = vmul.f32 %v167, %v81
  %170 = vset.pattern.permute.xlu0 3
  %171 = vperm.xlu0 %170, %v152
  %v172 = vpop.permute.xlu0 %171
  %v174 = vmul.f32 %v172, %v88
  %v175 = vadd.f32 %v159, %v164
  %v176 = vadd.f32 %v169, %v174
  %v177 = vadd.f32 %v175, %v176
  %v178 = vld [vmem:[#allocation2 + $0x4] sm:$0x1]
  %v179 = vadd.f32 %v178, %v177
  %v180 = vtanh.pop %v179
  %181 = vst.msk [vmem:[%s1 + $0x4] sm:$0x1] %vm61, %v180
  %183 = vset.pattern.permute.xlu0 0
  %184 = vperm.xlu0 %183, %v180
  %v185 = vpop.permute.xlu0 %184
  %v187 = vmul.f32 %v185, %v10
  %188 = vset.pattern.permute.xlu0 1
  %189 = vperm.xlu0 %188, %v180
  %v190 = vpop.permute.xlu0 %189
  %v192 = vmul.f32 %v190, %v74
  %193 = vset.pattern.permute.xlu0 2
  %194 = vperm.xlu0 %193, %v180
  %v195 = vpop.permute.xlu0 %194
  %v197 = vmul.f32 %v195, %v81
  %198 = vset.pattern.permute.xlu0 3
  %199 = vperm.xlu0 %198, %v180
  %v200 = vpop.permute.xlu0 %199
  %v202 = vmul.f32 %v200, %v88
  %v203 = vadd.f32 %v187, %v192
  %v204 = vadd.f32 %v197, %v202
  %v205 = vadd.f32 %v203, %v204
  %v206 = vld [vmem:[#allocation2 + $0x5] sm:$0x1]
  %v207 = vadd.f32 %v206, %v205
  %v208 = vtanh.pop %v207
  %209 = vst.msk [vmem:[%s1 + $0x5] sm:$0x1] %vm61, %v208
  %211 = vset.pattern.permute.xlu0 0
  %212 = vperm.xlu0 %211, %v208
  %v213 = vpop.permute.xlu0 %212
  %v215 = vmul.f32 %v213, %v10
  %216 = vset.pattern.permute.xlu0 1
  %217 = vperm.xlu0 %216, %v208
  %v218 = vpop.permute.xlu0 %217
  %v220 = vmul.f32 %v218, %v74
  %221 = vset.pattern.permute.xlu0 2
  %222 = vperm.xlu0 %221, %v208
  %v223 = vpop.permute.xlu0 %222
  %v225 = vmul.f32 %v223, %v81
  %226 = vset.pattern.permute.xlu0 3
  %227 = vperm.xlu0 %226, %v208
  %v228 = vpop.permute.xlu0 %227
  %v230 = vmul.f32 %v228, %v88
  %v231 = vadd.f32 %v215, %v220
  %v232 = vadd.f32 %v225, %v230
  %v233 = vadd.f32 %v231, %v232
  %v234 = vld [vmem:[#allocation2 + $0x6] sm:$0x1]
  %v235 = vadd.f32 %v234, %v233
  %v236 = vtanh.pop %v235
  %237 = vst.msk [vmem:[%s1 + $0x6] sm:$0x1] %vm61, %v236
  %239 = vset.pattern.permute.xlu0 0
  %240 = vperm.xlu0 %239, %v236
  %v241 = vpop.permute.xlu0 %240
  %v243 = vmul.f32 %v241, %v10
  %244 = vset.pattern.permute.xlu0 1
  %245 = vperm.xlu0 %244, %v236
  %v246 = vpop.permute.xlu0 %245
  %v248 = vmul.f32 %v246, %v74
  %249 = vset.pattern.permute.xlu0 2
  %250 = vperm.xlu0 %249, %v236
  %v251 = vpop.permute.xlu0 %250
  %v253 = vmul.f32 %v251, %v81
  %254 = vset.pattern.permute.xlu0 3
  %255 = vperm.xlu0 %254, %v236
  %v256 = vpop.permute.xlu0 %255
  %v258 = vmul.f32 %v256, %v88
  %v259 = vadd.f32 %v243, %v248
  %v260 = vadd.f32 %v253, %v258
  %v261 = vadd.f32 %v259, %v260
  %v262 = vld [vmem:[#allocation2 + $0x7] sm:$0x1]
  %v263 = vadd.f32 %v262, %v261
  %v264 = vtanh.pop %v263
  %265 = vst.msk [vmem:[%s1 + $0x7] sm:$0x1] %vm61, %v264
  // Predicated region
  $region6: #{tpu_custom_call.1} parent=0 // pred_check
    _
  $region7: #{tpu_custom_call.1} parent=0 // pred_check_branch
    %267 = sbr.rel (0) target = $region9
  $region8: #{tpu_custom_call.1} parent=0 // pred_region
    _
  $region9: #{tpu_custom_call.1} parent=0 // pred_fallthru
    _
  // Predicated region
  $region10: #{tpu_custom_call.1} parent=0 // pred_check
    _
  $region11: #{tpu_custom_call.1} parent=0 // pred_check_branch
    %269 = sbr.rel (0) target = $region13
  $region12: #{tpu_custom_call.1} parent=0 // pred_region
    _
  $region13: #{tpu_custom_call.1} parent=0 // pred_fallthru
    _

</llo_original>
